<compile_context>
chip_gen: v7x
topology: tpu7x:2x2x1
jax: 0.10.0
libtpu: 0.0.40
codegen_flags: <defaults>
</compile_context>

<pallas_src>
import jax
import jax.numpy as jnp
from jax.experimental import pallas as pl
from jax.experimental.pallas import tpu as pltpu


def _round_up(x, m):
    return (x + m - 1) // m * m


def _pick_tile_h(H, Wp, Cin, max_th=8, slab_budget_bytes=128 * 1024):
    """Largest row-tile height TH that divides H, is <= max_th, and keeps the
    per-tap bf16 input slab (TH*Wp x Cin) within a modest budget."""
    cap = max(1, min(max_th, H, slab_budget_bytes // max(1, Wp * Cin * 2)))
    for th in range(cap, 0, -1):
        if H % th == 0:
            return th
    return 1


# ---------------------------------------------------------------------------
# One-time probe of pltpu.roll's rotation direction (cached).  The 3x3 column
# shifts below need a known direction; probing keeps the kernel robust across
# jax versions instead of hard-coding a convention.
# ---------------------------------------------------------------------------
_ROLL_IS_JNP = None


def _roll_probe_kernel(x_ref, o_ref):
    o_ref[...] = pltpu.roll(x_ref[...], shift=1, axis=0)


def _roll_follows_jnp_convention():
    global _ROLL_IS_JNP
    if _ROLL_IS_JNP is None:
        x = jax.lax.broadcasted_iota(jnp.float32, (8, 128), 0)
        y = pl.pallas_call(
            _roll_probe_kernel,
            out_shape=jax.ShapeDtypeStruct((8, 128), jnp.float32),
        )(x)
        # jnp.roll convention: y[1, 0] == x[0, 0] == 0   (flipped: == 2)
        _ROLL_IS_JNP = bool(abs(float(y[1, 0])) < 0.5)
    return _ROLL_IS_JNP


# ---------------------------------------------------------------------------
# Fused kernel:  conv3x3 -> BN(eval, folded) -> LeakyReLU(0.1) -> conv1x1
# ---------------------------------------------------------------------------
def _make_scale_pred_kernel(TH, Wp, Cin, C1, C2p, roll_is_jnp):
    S = TH * Wp  # rows of this tile, flattened over the padded width

    def kernel(x_ref, w1_ref, scale_ref, bias_ref, w2_ref, b2_ref,
               out_ref, acc_ref):
        # x_ref    : (Hp*Wp, Cin) bf16  whole padded image of this batch elem,
        #                               resident in VMEM across its row tiles
        # w1_ref   : (9, Cin, C1) bf16  3x3 conv taps, index = ky*3 + kx
        # scale/bias : (1, C1) f32      folded BatchNorm affine
        # w2_ref   : (C1, C2p) bf16     1x1 conv weights (lane-padded)
        # b2_ref   : (1, C2p) f32       1x1 conv bias   (lane-padded)
        # out_ref  : (S, C2p) f32       this row tile, flattened over padded W
        # acc_ref  : (S, C1) f32        VMEM accumulator scratch
        i = pl.program_id(1)
        base = i * S                       # flat offset of padded row i*TH

        first = True
        for ky in range(3):
            start = pl.multiple_of(base + ky * Wp, 8)   # sublane-aligned
            rows = x_ref[pl.ds(start, S), :]            # (S, Cin) bf16
            for kx in range(3):
                p = jnp.dot(rows, w1_ref[ky * 3 + kx],
                            preferred_element_type=jnp.float32)
                if kx:
                    # Apply the kx column shift to the f32 partials via an XLU
                    # sublane roll:  p[f] <- p[f + kx].  Wrapped rows land only
                    # in the discarded pad columns (wc >= W).
                    shift = (S - kx) if roll_is_jnp else kx
                    p = pltpu.roll(p, shift=shift, axis=0)
                if first:
                    acc_ref[...] = p
                    first = False
                else:
                    acc_ref[...] += p

        # BatchNorm (eval-mode, folded) + LeakyReLU(0.1), all in f32.
        h = acc_ref[...] * scale_ref[...] + bias_ref[...]
        h = jnp.where(h > 0, h, 0.1 * h)

        # 1x1 conv (+ bias): bf16 operands into the MXU, f32 accumulate.
        y = jnp.dot(h.astype(jnp.bfloat16), w2_ref[...],
                    preferred_element_type=jnp.float32)
        out_ref[...] = (y + b2_ref[...]).astype(out_ref.dtype)

    return kernel


# ---------------------------------------------------------------------------
# Public wrapper: NCHW in, (B, 3, H, W, num_classes+5) out (like PyTorch).
# ---------------------------------------------------------------------------
def scale_prediction(x_nchw, params, num_classes):
    w1, bn_gamma, bn_beta, bn_mean, bn_var, w2, b2 = params
    B, Cin, H, W = x_nchw.shape
    C1 = w1.shape[3]
    C2 = w2.shape[1]
    nc5 = num_classes + 5
    assert C2 == 3 * nc5

    # --- fold BatchNorm (eval mode) into a per-channel affine ---------------
    eps = 1e-5  # PyTorch BatchNorm2d default
    scale = (bn_gamma / jnp.sqrt(bn_var + eps)).astype(jnp.float32)
    bn_scale = scale.reshape(1, C1)
    bn_bias = (bn_beta.astype(jnp.float32)
               - bn_mean.astype(jnp.float32) * scale).reshape(1, C1)

    # --- weights: bf16 into the MXU, lane-dense (padded) output channels ----
    C2p = _round_up(C2, 128)
    w1_k = w1.astype(jnp.bfloat16).reshape(9, Cin, C1)         # (ky*3+kx, Cin, C1)
    w2_k = jnp.pad(w2.astype(jnp.bfloat16), ((0, 0), (0, C2p - C2)))
    b2_k = jnp.pad(b2.astype(jnp.float32), (0, C2p - C2)).reshape(1, C2p)

    # --- activations: NCHW -> NHWC bf16, halo + sublane-alignment padding ---
    Hp = H + 2
    Wp = _round_up(W + 2, 8)                 # padded width, sublane aligned
    x = jnp.transpose(x_nchw, (0, 2, 3, 1)).astype(jnp.bfloat16)
    xpad = jnp.pad(x, ((0, 0), (1, 1), (1, Wp - W - 1), (0, 0)))
    xflat = xpad.reshape(B, Hp * Wp, Cin)    # (row, col) flattened -> sublanes
    # TODO(synk): the halo pad is still one wrapper-side XLA pass; it could be
    # folded into the kernel with masked boundary taps.

    TH = _pick_tile_h(H, Wp, Cin)
    NR = H // TH
    S = TH * Wp

    kernel = _make_scale_pred_kernel(
        TH=TH, Wp=Wp, Cin=Cin, C1=C1, C2p=C2p,
        roll_is_jnp=_roll_follows_jnp_convention())

    out_flat = pl.pallas_call(
        kernel,
        out_shape=jax.ShapeDtypeStruct((B, H * Wp, C2p), jnp.float32),
        grid_spec=pltpu.PrefetchScalarGridSpec(
            num_scalar_prefetch=0,
            grid=(B, NR),
            in_specs=[
                # whole padded image of batch b; constant across its row tiles
                pl.BlockSpec((None, Hp * Wp, Cin), lambda b, i: (b, 0, 0)),
                # parameters: constant index maps -> DMA'd once, stay resident
                pl.BlockSpec((9, Cin, C1), lambda b, i: (0, 0, 0)),
                pl.BlockSpec((1, C1), lambda b, i: (0, 0)),
                pl.BlockSpec((1, C1), lambda b, i: (0, 0)),
                pl.BlockSpec((C1, C2p), lambda b, i: (0, 0)),
                pl.BlockSpec((1, C2p), lambda b, i: (0, 0)),
            ],
            out_specs=pl.BlockSpec((None, S, C2p), lambda b, i: (b, i, 0)),
            scratch_shapes=[pltpu.VMEM((S, C1), jnp.float32)],
        ),
        compiler_params=pltpu.CompilerParams(
            dimension_semantics=("parallel", "parallel"),
            # Explicit scoped-VMEM limit: enough for the resident image +
            # bf16 weights + double-buffered output tiles, with headroom on
            # v7x's 64 MiB physical VMEM.
            vmem_limit_bytes=32 * 1024 * 1024,
        ),
    )(xflat, w1_k, bn_scale, bn_bias, w2_k, b2_k)

    # Drop pad columns / pad channels, then match the PyTorch reshape+permute:
    # (B,H,W,C2) -> (B,H,W,3,nc+5) -> (B,3,H,W,nc+5).  The permute is left to
    # XLA on purpose (emitting it from the kernel would make stores lane-sparse).
    out = out_flat.reshape(B, H, Wp, C2p)[:, :, :W, :C2]
    out = out.reshape(B, H, W, 3, nc5).transpose(0, 3, 1, 2, 4)
    return out


# ---------------------------------------------------------------------------
# Pure-JAX f32 reference (eval-mode PyTorch semantics) and parameter init.
# ---------------------------------------------------------------------------
def scale_prediction_reference(x_nchw, params, num_classes):
    w1, bn_gamma, bn_beta, bn_mean, bn_var, w2, b2 = params
    B, Cin, H, W = x_nchw.shape
    C1 = w1.shape[3]
    C2 = w2.shape[1]
    nc5 = num_classes + 5
    eps = 1e-5
    y = jax.lax.conv_general_dilated(
        x_nchw.astype(jnp.float32), w1.astype(jnp.float32),
        window_strides=(1, 1), padding=((1, 1), (1, 1)),
        dimension_numbers=("NCHW", "HWIO", "NCHW"),
        precision=jax.lax.Precision.HIGHEST)
    scale = bn_gamma / jnp.sqrt(bn_var + eps)
    y = y * scale[None, :, None, None] + (bn_beta - bn_mean * scale)[None, :, None, None]
    y = jnp.where(y > 0, y, 0.1 * y)
    y = jax.lax.conv_general_dilated(
        y, w2.reshape(1, 1, C1, C2).astype(jnp.float32),
        window_strides=(1, 1), padding="VALID",
        dimension_numbers=("NCHW", "HWIO", "NCHW"),
        precision=jax.lax.Precision.HIGHEST) + b2[None, :, None, None]
    return y.reshape(B, 3, nc5, H, W).transpose(0, 1, 3, 4, 2)


def init_params(key, in_channels, num_classes):
    C1 = 2 * in_channels
    C2 = (num_classes + 5) * 3
    k1, k2, k3, k4 = jax.random.split(key, 4)
    # conv1: 3x3, no bias (HWIO layout)
    w1 = 0.1 * jax.random.normal(k1, (3, 3, in_channels, C1), jnp.float32)
    # BatchNorm2d(C1) params + running stats
    bn_gamma = 1.0 + 0.05 * jax.random.normal(k2, (C1,), jnp.float32)
    bn_beta = 0.05 * jax.random.normal(k3, (C1,), jnp.float32)
    bn_mean = jnp.zeros((C1,), jnp.float32)
    bn_var = jnp.ones((C1,), jnp.float32)
    # conv2: 1x1 with bias
    w2 = 0.1 * jax.random.normal(k4, (C1, C2), jnp.float32)
    b2 = jnp.linspace(-0.1, 0.1, C2, dtype=jnp.float32)
    return (w1, bn_gamma, bn_beta, bn_mean, bn_var, w2, b2)


if __name__ == "__main__":
    B, Cin, H, W = 2, 4, 16, 16
    num_classes = 3

    key = jax.random.PRNGKey(0)
    k_inp, k_par = jax.random.split(key)
    x = jax.random.normal(k_inp, (B, Cin, H, W), jnp.float32)
    params = init_params(k_par, Cin, num_classes)

    out = scale_prediction(x, params, num_classes)
    out = jax.block_until_ready(out)
    assert out.shape == (B, 3, H, W, num_classes + 5), out.shape

    # Numerical check vs a pure-JAX f32 reference (kernel uses bf16 operands
    # with f32 accumulation, so allow a small tolerance).
    ref = scale_prediction_reference(x, params, num_classes)
    err = float(jnp.max(jnp.abs(out - ref)))
    assert err < 5e-2, f"max |err| vs reference = {err}"

    print("KERNEL_OK")
</pallas_src>

<mosaic_0001>
module attributes {stable_mosaic.version = 11 : i64} {
  func.func @_roll_probe_kernel(%arg0: memref<8x128xf32, #tpu.memory_space<vmem>>, %arg1: memref<8x128xf32, #tpu.memory_space<vmem>>) attributes {dimension_semantics = [], scalar_prefetch = 0 : i64, scratch_operands = 0 : i64, tpu.core_type = #tpu.core_type<tc>} {
    %c0 = arith.constant 0 : index
    %c0_0 = arith.constant 0 : index
    %0 = vector.load %arg0[%c0, %c0_0] : memref<8x128xf32, #tpu.memory_space<vmem>>, vector<8x128xf32>
    %c1_i32 = arith.constant 1 : i32
    %1 = tpu.dynamic_rotate %0 by %c1_i32 dim 0 : vector<8x128xf32>, i32 -> vector<8x128xf32>
    %c0_1 = arith.constant 0 : index
    %c0_2 = arith.constant 0 : index
    %2 = vector.load %arg1[%c0_1, %c0_2] : memref<8x128xf32, #tpu.memory_space<vmem>>, vector<8x128xf32>
    tpu.vector_store %arg1[%c0_1, %c0_2], %1 {strides = array<i32>} : memref<8x128xf32, #tpu.memory_space<vmem>>, vector<8x128xf32>,
    return
  }
}

</mosaic_0001>

<llo_original>
// kernel: tpu_custom_call.1
$region0: #{tpu_custom_call.1}
  #allocation0 [shape = 'u32[]', space=smem, size = 0x4, offset = 0x4, fixed_abs, tag = 'smem constant byte address 0x4 - core index']
  #allocation1 [shape = 'u32[144,128]{1,0:T(1,128)}', space=vmem, size = 0x12000, scoped, tag = 'internal scratch']
  %s0 = inlined_call_operand.hbm [shape: f32[8,128], index: 0, kind: input, shape index: {}]
  %s1 = inlined_call_operand.hbm [shape: f32[8,128], index: 1, kind: output, shape index: {}]
  %s2 = sld [smem:[#allocation0]]
  $region18: #{tpu_custom_call.1} parent=0
    _
  %s4 = ssub.s32 1, %s2
  %s5 = scalar_select 0, %s4, %s2
  $region1: #{tpu_custom_call.1} parent=0
    #allocation2 [shape = 'u8[4096]{0}', space=vmem, size = 0x1000, scoped, tag = 'input window, operand 0, single buffered']
    #allocation3 [shape = 's32[1]{0}', space=sflag, size = 0x4, scoped, tag = 'scoped memory for tpu_custom_call.1']
    #allocation4 [shape = 's32[1]{0}', space=sflag, size = 0x4, scoped, tag = 'scoped memory for tpu_custom_call.1']
    #allocation5 [shape = 'u8[4096]{0}', space=vmem, size = 0x1000, scoped, tag = 'output window, operand 0, single buffered']
    %6 = vsyncpa [#allocation3], 0
    %7 = vsyncpa [#allocation4], 0
    // Predicated region
    $region2: #{tpu_custom_call.1} parent=1 // pred_check
      _
    $region3: #{tpu_custom_call.1} parent=1 // pred_check_branch
      %9 = sbr.rel (0) target = $region5
    $region4: #{tpu_custom_call.1} parent=1 // pred_region
      %s11 = ssub.s32 128, 128
      %12 = vsyncadd [#allocation3], %s11
      %s14 = sshll.u32 [#allocation2], 4
      %s15 = int_to_ptr.vmem [resolvable:$true] %s14
      %17 = dma.hbm_to_vmem [thread:$0]  %s0, 128, %s15, [#allocation3]
    $region5: #{tpu_custom_call.1} parent=1 // pred_fallthru
      _
    // Predicated region
    $region6: #{tpu_custom_call.1} parent=1 // pred_check
      _
    $region7: #{tpu_custom_call.1} parent=1 // pred_check_branch
      %19 = sbr.rel (0) target = $region9
    $region8: #{tpu_custom_call.1} parent=1 // pred_region
      %20 = dma.done [#allocation3], 128
    $region9: #{tpu_custom_call.1} parent=1 // pred_fallthru
      _
    %v21 = vld [vmem:[#allocation2] sm:$0xff]
    %v22 = vrot.slane %v21, 7
    %23 = vst [vmem:[#allocation5] sm:$0xff] %v22
    // Predicated region
    $region10: #{tpu_custom_call.1} parent=1 // pred_check
      _
    $region11: #{tpu_custom_call.1} parent=1 // pred_check_branch
      %25 = sbr.rel (0) target = $region13
    $region12: #{tpu_custom_call.1} parent=1 // pred_region
      %s27 = ssub.s32 128, 128
      %28 = vsyncadd [#allocation4], %s27
      %s30 = sshll.u32 [#allocation5], 4
      %s31 = int_to_ptr.vmem [resolvable:$true] %s30
      %33 = dma.vmem_to_hbm [thread:$0]  %s31, 128, %s1, [#allocation4]
    $region13: #{tpu_custom_call.1} parent=1 // pred_fallthru
      _
    // Predicated region
    $region14: #{tpu_custom_call.1} parent=1 // pred_check
      _
    $region15: #{tpu_custom_call.1} parent=1 // pred_check_branch
      %35 = sbr.rel (0) target = $region17
    $region16: #{tpu_custom_call.1} parent=1 // pred_region
      %36 = dma.done [#allocation4], 128
    $region17: #{tpu_custom_call.1} parent=1 // pred_fallthru
      _
    %37 = vsyncpa [#allocation3], 1
    %38 = vsyncpa [#allocation4], 1

</llo_original>
